<compile_context>
chip_gen: v7x
topology: tpu7x:2x2x1
jax: 0.10.0
libtpu: 0.0.40
codegen_flags: <defaults>
</compile_context>

<pallas_src>
import functools

import jax
import jax.numpy as jnp
import numpy as np
from jax import lax
from jax.experimental import pallas as pl
from jax.experimental.pallas import tpu as pltpu


def _round_up(x, m):
    return ((x + m - 1) // m) * m


GT = 8  # (batch, class) groups processed per grid step of the IoU+NMS kernel


# ----------------------------------------------------------------------------
# Pallas kernel 1: fused center_size + variance decode.
# ----------------------------------------------------------------------------
def _decode_kernel(loc_ref, priors_ref, out_ref, *, var0, var1):
    # loc_ref:    (1, 4, Sc, 128)  rows = [lx, ly, lw, lh]
    # priors_ref: (4, Sc, 128)     point-form rows = [px1, py1, px2, py2]
    # out_ref:    (1, 4, Sc, 128)  rows = [x1, y1, x2, y2]
    pri = priors_ref[...]
    px1, py1, px2, py2 = pri[0], pri[1], pri[2], pri[3]

    # center_size fused in-kernel
    pcx = (px1 + px2) * 0.5
    pcy = (py1 + py2) * 0.5
    pw = px2 - px1
    ph = py2 - py1

    loc = loc_ref[0]
    lx, ly, lw, lh = loc[0], loc[1], loc[2], loc[3]

    cx = pcx + lx * var0 * pw
    cy = pcy + ly * var0 * ph
    w = pw * jnp.exp(lw * var1)
    h = ph * jnp.exp(lh * var1)

    x1 = cx - 0.5 * w
    y1 = cy - 0.5 * h
    # direct row stores (no concatenate)
    out_ref[0, 0] = x1
    out_ref[0, 1] = y1
    out_ref[0, 2] = x1 + w
    out_ref[0, 3] = y1 + h


def decode_pallas(loc_t, priors_t, variances):
    # loc_t: (B, 4, P_pad)  priors_t: (4, P_pad)  with P_pad % 1024 == 0
    B, _, Pp = loc_t.shape
    assert Pp % 1024 == 0
    S = Pp // 128
    Sc = 8
    loc4 = loc_t.reshape(B, 4, S, 128)
    pri4 = priors_t.reshape(4, S, 128)
    kern = functools.partial(_decode_kernel,
                             var0=float(variances[0]), var1=float(variances[1]))
    out = pl.pallas_call(
        kern,
        out_shape=jax.ShapeDtypeStruct((B, 4, S, 128), jnp.float32),
        grid=(B, S // Sc),
        in_specs=[
            pl.BlockSpec((1, 4, Sc, 128), lambda b, s: (b, 0, s, 0)),
            pl.BlockSpec((4, Sc, 128), lambda b, s: (0, s, 0)),
        ],
        out_specs=pl.BlockSpec((1, 4, Sc, 128), lambda b, s: (b, 0, s, 0)),
        compiler_params=pltpu.CompilerParams(
            dimension_semantics=("parallel", "parallel")),
    )(loc4, pri4)
    return out.reshape(B, 4, Pp)


# ----------------------------------------------------------------------------
# Pallas kernel 2: fused pairwise IoU + greedy NMS for GT groups per step.
# IoU matrices live only in VMEM scratch; output is the keep mask.
# ----------------------------------------------------------------------------
def _iou_nms_kernel(boxes_ref, boxes_t_ref, valid_ref, keep_ref, iou_sc,
                    *, nms_thresh, k_limit):
    # boxes_ref:   (GT, K, 4)   candidates sorted by descending score
    # boxes_t_ref: (GT, 4, K)   same boxes, lane-dense (coords on sublanes)
    # valid_ref:   (GT, 1, K)   1.0 where score > conf_thresh
    # keep_ref:    (GT, 1, K)   output keep mask (1.0 keep)
    # iou_sc:      (GT, K, K)   VMEM scratch -- the IoU never touches HBM
    Gt = boxes_ref.shape[0]
    K = boxes_ref.shape[1]

    # ---- phase 1: pairwise IoU per group into VMEM scratch ----
    for g in range(Gt):
        a = boxes_ref[g]                                  # (K, 4)
        bt = boxes_t_ref[g]                               # (4, K)
        ax1, ay1, ax2, ay2 = a[:, 0:1], a[:, 1:2], a[:, 2:3], a[:, 3:4]
        bx1, by1, bx2, by2 = bt[0:1, :], bt[1:2, :], bt[2:3, :], bt[3:4, :]
        iw = jnp.maximum(jnp.minimum(ax2, bx2) - jnp.maximum(ax1, bx1), 0.0)
        ih = jnp.maximum(jnp.minimum(ay2, by2) - jnp.maximum(ay1, by1), 0.0)
        inter = iw * ih
        area_a = (ax2 - ax1) * (ay2 - ay1)
        area_b = (bx2 - bx1) * (by2 - by1)
        union = area_a + area_b - inter
        # union == 0 (zero-padded / degenerate boxes) must give IoU 0, not NaN
        iou = jnp.where(
            union > 0.0,
            inter * pl.reciprocal(jnp.maximum(union, 1e-20), approx=False),
            0.0)
        iou_sc[g] = iou

    # ---- phase 2: greedy suppression, vectorized over the GT groups ----
    # TODO(synk): the suppression order is inherently sequential (data
    # dependent); it is kept as an in-kernel fori_loop over candidates.
    valid_b = valid_ref[...] > 0.5                        # (GT, 1, K)
    lane = lax.broadcasted_iota(jnp.int32, (Gt, 1, K), 2)

    def body(i, sup):
        row = iou_sc[:, pl.ds(i, 1), :]                   # (GT, 1, K) anchor row i
        anchor = lane == i
        kept_i = jnp.max(
            jnp.where(anchor & valid_b & (sup < 0.5), 1.0, 0.0),
            axis=-1, keepdims=True)                       # (GT, 1, 1)
        # "> thresh" (not "not <=") fails safe if a NaN ever slips through
        new_sup = jnp.where((lane > i) & (row > nms_thresh), kept_i, 0.0)
        return jnp.maximum(sup, new_sup)

    sup = lax.fori_loop(0, k_limit, body, jnp.zeros((Gt, 1, K), jnp.float32))
    keep_ref[...] = jnp.where(valid_b & (sup < 0.5), 1.0, 0.0)


def iou_nms_pallas(cand_boxes, cand_boxes_t, valid, *, nms_thresh, k_limit, gt=GT):
    # cand_boxes: (G_pad, K_pad, 4), cand_boxes_t: (G_pad, 4, K_pad),
    # valid: (G_pad, 1, K_pad);  G_pad % gt == 0, K_pad % 128 == 0.
    Gp, K, _ = cand_boxes.shape
    assert Gp % gt == 0 and K % 128 == 0
    kern = functools.partial(_iou_nms_kernel, nms_thresh=float(nms_thresh),
                             k_limit=int(k_limit))
    return pl.pallas_call(
        kern,
        out_shape=jax.ShapeDtypeStruct((Gp, 1, K), jnp.float32),
        grid=(Gp // gt,),
        in_specs=[
            pl.BlockSpec((gt, K, 4), lambda g: (g, 0, 0)),
            pl.BlockSpec((gt, 4, K), lambda g: (g, 0, 0)),
            pl.BlockSpec((gt, 1, K), lambda g: (g, 0, 0)),
        ],
        out_specs=pl.BlockSpec((gt, 1, K), lambda g: (g, 0, 0)),
        scratch_shapes=[pltpu.VMEM((gt, K, K), jnp.float32)],
        compiler_params=pltpu.CompilerParams(dimension_semantics=("parallel",)),
    )(cand_boxes, cand_boxes_t, valid)


# ----------------------------------------------------------------------------
# Detection forward
# ----------------------------------------------------------------------------
def detection_forward(loc, conf, prior, *, num_classes, bkg_label=0, top_k=200,
                      conf_thresh=0.01, nms_thresh=0.45, keep_top_k=100,
                      variances=(0.1, 0.2)):
    if nms_thresh <= 0:
        raise ValueError('nms_threshold must be non negative.')
    B = loc.shape[0]
    P = prior.shape[2] // 4
    C = num_classes

    loc_data = loc.reshape(B, P, 4).astype(jnp.float32)
    conf_data = conf.reshape(B, P, C).astype(jnp.float32)
    priors_pf = prior[0, 0].reshape(P, 4).astype(jnp.float32)   # point form x1y1x2y2

    # ---- decode (Pallas): lane-dense P-last layout padded to 8x128 tiles ----
    P_pad = _round_up(P, 1024)
    pad_p = P_pad - P
    loc_t = jnp.pad(jnp.transpose(loc_data, (0, 2, 1)), ((0, 0), (0, 0), (0, pad_p)))
    priors_t = jnp.pad(priors_pf.T, ((0, 0), (0, pad_p)))
    decoded_t = decode_pallas(loc_t, priors_t, variances)       # (B, 4, P_pad)

    # ---- per-(batch, class >= 1) candidate selection (background skipped) ----
    Gc = C - 1
    G = B * Gc
    K = min(int(top_k), P)
    # TODO(synk): lax.top_k is an exact full sort per group; a Pallas two-stage
    # partial top-k (or lax.approx_max_k) reading conf in its native (B,P,C)
    # layout would avoid this transpose for very large P.
    scores = jnp.transpose(conf_data, (0, 2, 1))[:, 1:, :].reshape(G, P)
    top_scores, top_idx = lax.top_k(scores, K)                  # (G, K) descending
    valid = (top_scores > conf_thresh).astype(jnp.float32)

    b_of_g = jnp.arange(G) // Gc
    cl_of_g = jnp.arange(G) % Gc + 1
    # gather straight from the lane-dense decoded tensor (no (B,P,4) copy)
    cand_boxes = decoded_t[b_of_g[:, None], :, top_idx]          # (G, K, 4)

    # pad candidates to x128 lanes and groups to a multiple of GT
    K_pad = _round_up(K, 128)
    G_pad = _round_up(G, GT)
    cand_p = jnp.pad(cand_boxes, ((0, G_pad - G), (0, K_pad - K), (0, 0)))
    valid_p = jnp.pad(valid, ((0, G_pad - G), (0, K_pad - K)))
    cand_pt = jnp.transpose(cand_p, (0, 2, 1))                   # (G_pad, 4, K_pad)

    keep = iou_nms_pallas(cand_p, cand_pt, valid_p[:, None, :],
                          nms_thresh=nms_thresh, k_limit=K)       # (G_pad, 1, K_pad)
    keep = keep[:G, 0, :] > 0.5                                   # (G, K_pad)

    # ---- padded output assembly ---------------------------------------------
    rank = jnp.cumsum(keep.astype(jnp.int32), axis=1) - 1
    take = keep & (rank < keep_top_k)
    counts = jnp.minimum(jnp.sum(keep.astype(jnp.int32), axis=1), keep_top_k)

    scores_p = jnp.pad(top_scores, ((0, 0), (0, K_pad - K)))
    rows = jnp.concatenate([
        jnp.broadcast_to(b_of_g[:, None, None].astype(jnp.float32), (G, K_pad, 1)),
        jnp.broadcast_to(cl_of_g[:, None, None].astype(jnp.float32), (G, K_pad, 1)),
        scores_p[:, :, None],
        cand_p[:G],
    ], axis=-1)                                                   # (G, K_pad, 7)

    # TODO(synk): torch concatenates a variable number of [b, cl, score, x1..y2]
    # rows; with static shapes we return a padded (G*keep_top_k, 7) tensor plus
    # per-(batch, class) counts (unused slots stay zero).
    dst = jnp.where(take, rank, keep_top_k)                       # OOB rank -> dropped
    out = jnp.zeros((G, keep_top_k, 7), jnp.float32)
    out = out.at[jnp.arange(G)[:, None], dst].set(rows, mode='drop')

    return {
        'detections': out.reshape(G * keep_top_k, 7),
        'counts': counts.reshape(B, Gc),
        'num_detections': jnp.sum(counts),
    }


# ----------------------------------------------------------------------------
# NumPy greedy-NMS reference (mirrors the in-kernel semantics exactly).
# ----------------------------------------------------------------------------
def _ref_nms_keep(boxes, valid, thresh, k_limit):
    boxes = np.asarray(boxes, np.float32)
    valid = np.asarray(valid, bool)
    G, K = valid.shape
    keep = np.zeros((G, K), bool)
    idx = np.arange(K)
    for g in range(G):
        sup = np.zeros((K,), bool)
        x1, y1, x2, y2 = (boxes[g, :, c] for c in range(4))
        area = (x2 - x1) * (y2 - y1)
        for i in range(k_limit):
            if valid[g, i] and not sup[i]:
                keep[g, i] = True
                iw = np.maximum(np.minimum(x2[i], x2) - np.maximum(x1[i], x1),
                                np.float32(0))
                ih = np.maximum(np.minimum(y2[i], y2) - np.maximum(y1[i], y1),
                                np.float32(0))
                inter = iw * ih
                union = area[i] + area - inter
                iou = np.where(union > 0,
                               inter / np.maximum(union, np.float32(1e-20)),
                               np.float32(0))
                sup |= (idx > i) & (iou > thresh)
    return keep


# ----------------------------------------------------------------------------
if __name__ == "__main__":
    key = jax.random.PRNGKey(0)
    B, P, C = 2, 32, 8
    top_k, keep_top_k = 16, 5
    conf_thresh, nms_thresh = 0.1, 0.45

    # deterministic priors: 8x4 grid of centers, fixed w/h, point form
    cx = (jnp.arange(8, dtype=jnp.float32) + 0.5) / 8.0
    cy = (jnp.arange(4, dtype=jnp.float32) + 0.5) / 4.0
    cxg, cyg = jnp.meshgrid(cx, cy, indexing='ij')
    cxg, cyg = cxg.reshape(-1), cyg.reshape(-1)
    w = jnp.full((P,), 0.2, jnp.float32)
    h = jnp.full((P,), 0.25, jnp.float32)
    priors_pf = jnp.stack([cxg - w / 2, cyg - h / 2, cxg + w / 2, cyg + h / 2], axis=1)
    prior_var = jnp.concatenate([jnp.full((P, 2), 0.1, jnp.float32),
                                 jnp.full((P, 2), 0.2, jnp.float32)], axis=1)
    prior = jnp.stack([priors_pf.reshape(-1), prior_var.reshape(-1)], axis=0)[None]  # (1,2,P*4)

    k1, k2 = jax.random.split(key)
    loc = jax.random.normal(k1, (B, P * 4), jnp.float32) * 0.1
    conf = jax.random.normal(k2, (B, P * C), jnp.float32)

    out = detection_forward(loc, conf, prior, num_classes=C, top_k=top_k,
                            conf_thresh=conf_thresh, nms_thresh=nms_thresh,
                            keep_top_k=keep_top_k)
    jax.block_until_ready(out['detections'])

    # sanity 1: Pallas decode vs plain-JAX reference decode
    loc_r = loc.reshape(B, P, 4)
    pcs = jnp.concatenate([(priors_pf[:, 2:] + priors_pf[:, :2]) / 2,
                           priors_pf[:, 2:] - priors_pf[:, :2]], axis=1)
    cxcy = pcs[None, :, :2] + loc_r[..., :2] * 0.1 * pcs[None, :, 2:]
    wh = pcs[None, :, 2:] * jnp.exp(loc_r[..., 2:] * 0.2)
    ref = jnp.concatenate([cxcy - wh / 2, cxcy + wh / 2], axis=-1)
    P_pad = _round_up(P, 1024)
    got = jnp.transpose(
        decode_pallas(
            jnp.pad(jnp.transpose(loc_r, (0, 2, 1)), ((0, 0), (0, 0), (0, P_pad - P))),
            jnp.pad(priors_pf.T, ((0, 0), (0, P_pad - P))),
            (0.1, 0.2)),
        (0, 2, 1))[:, :P, :]
    assert jnp.allclose(got, ref, atol=1e-5), "decode mismatch"

    # sanity 2: fused IoU+NMS kernel vs the NumPy greedy reference.  Box coords
    # sit on a 1/8 lattice so every IoU is a small exact rational far from the
    # (deliberately "ugly") test threshold; comparisons cannot flip on 1-ulp
    # reciprocal-vs-divide differences.
    Gp_t, Kp_t = 8, 128
    kk = jax.random.split(jax.random.PRNGKey(1), 5)
    bx1 = jax.random.randint(kk[0], (Gp_t, Kp_t), 0, 6).astype(jnp.float32) / 8.0
    by1 = jax.random.randint(kk[1], (Gp_t, Kp_t), 0, 6).astype(jnp.float32) / 8.0
    bw = jax.random.randint(kk[2], (Gp_t, Kp_t), 1, 4).astype(jnp.float32) / 8.0
    bh = jax.random.randint(kk[3], (Gp_t, Kp_t), 1, 4).astype(jnp.float32) / 8.0
    boxes_tst = jnp.stack([bx1, by1, bx1 + bw, by1 + bh], axis=-1)      # (Gp, Kp, 4)
    valid_tst = jax.random.uniform(kk[4], (Gp_t, Kp_t)) > 0.3
    test_thresh = 0.437
    keep_got = iou_nms_pallas(boxes_tst, jnp.transpose(boxes_tst, (0, 2, 1)),
                              valid_tst.astype(jnp.float32)[:, None, :],
                              nms_thresh=test_thresh, k_limit=Kp_t)
    keep_got = np.asarray(keep_got[:, 0, :] > 0.5)
    keep_ref = _ref_nms_keep(boxes_tst, valid_tst, test_thresh, Kp_t)
    assert (keep_got == keep_ref).all(), "nms keep mismatch"

    assert out['detections'].shape == (B * (C - 1) * keep_top_k, 7)
    assert int(out['num_detections']) >= 0
    print("KERNEL_OK")
</pallas_src>

<mosaic_0001>
module attributes {stable_mosaic.version = 11 : i64} {
  func.func @_decode_kernel(%arg0: i32, %arg1: i32, %arg2: memref<1x4x8x128xf32, #tpu.memory_space<vmem>>, %arg3: memref<4x8x128xf32, #tpu.memory_space<vmem>>, %arg4: memref<1x4x8x128xf32, #tpu.memory_space<vmem>>) attributes {dimension_semantics = [#tpu.dimension_semantics<parallel>, #tpu.dimension_semantics<parallel>], iteration_bounds = array<i64: 2, 1>, scalar_prefetch = 0 : i64, scratch_operands = 0 : i64, tpu.core_type = #tpu.core_type<tc>, window_params = [{transform_indices = @transform_0, window_bounds = array<i64: 1, 4, 8, 128>}, {transform_indices = @transform_1, window_bounds = array<i64: 4, 8, 128>}, {transform_indices = @transform_2, window_bounds = array<i64: 1, 4, 8, 128>}]} {
    %c0 = arith.constant 0 : index
    %c0_0 = arith.constant 0 : index
    %c0_1 = arith.constant 0 : index
    %0 = vector.load %arg3[%c0, %c0_0, %c0_1] : memref<4x8x128xf32, #tpu.memory_space<vmem>>, vector<4x8x128xf32>
    %1 = vector.extract_strided_slice %0 {offsets = [0, 0, 0], sizes = [1, 8, 128], strides = [1, 1, 1]} : vector<4x8x128xf32> to vector<1x8x128xf32>
    %2 = vector.shape_cast %1 : vector<1x8x128xf32> to vector<8x128xf32>
    %3 = vector.extract_strided_slice %0 {offsets = [1, 0, 0], sizes = [1, 8, 128], strides = [1, 1, 1]} : vector<4x8x128xf32> to vector<1x8x128xf32>
    %4 = vector.shape_cast %3 : vector<1x8x128xf32> to vector<8x128xf32>
    %5 = vector.extract_strided_slice %0 {offsets = [2, 0, 0], sizes = [1, 8, 128], strides = [1, 1, 1]} : vector<4x8x128xf32> to vector<1x8x128xf32>
    %6 = vector.shape_cast %5 : vector<1x8x128xf32> to vector<8x128xf32>
    %7 = vector.extract_strided_slice %0 {offsets = [3, 0, 0], sizes = [1, 8, 128], strides = [1, 1, 1]} : vector<4x8x128xf32> to vector<1x8x128xf32>
    %8 = vector.shape_cast %7 : vector<1x8x128xf32> to vector<8x128xf32>
    %9 = arith.addf %2, %6 : vector<8x128xf32>
    %cst = arith.constant 5.000000e-01 : f32
    %10 = vector.broadcast %cst : f32 to vector<8x128xf32>
    %11 = arith.mulf %9, %10 : vector<8x128xf32>
    %12 = arith.addf %4, %8 : vector<8x128xf32>
    %cst_2 = arith.constant 5.000000e-01 : f32
    %13 = vector.broadcast %cst_2 : f32 to vector<8x128xf32>
    %14 = arith.mulf %12, %13 : vector<8x128xf32>
    %15 = arith.subf %6, %2 : vector<8x128xf32>
    %16 = arith.subf %8, %4 : vector<8x128xf32>
    %c0_3 = arith.constant 0 : index
    %c0_4 = arith.constant 0 : index
    %c0_5 = arith.constant 0 : index
    %c0_6 = arith.constant 0 : index
    %17 = vector.load %arg2[%c0_3, %c0_4, %c0_5, %c0_6] : memref<1x4x8x128xf32, #tpu.memory_space<vmem>>, vector<1x4x8x128xf32>
    %18 = vector.shape_cast %17 : vector<1x4x8x128xf32> to vector<4x8x128xf32>
    %19 = vector.extract_strided_slice %18 {offsets = [0, 0, 0], sizes = [1, 8, 128], strides = [1, 1, 1]} : vector<4x8x128xf32> to vector<1x8x128xf32>
    %20 = vector.shape_cast %19 : vector<1x8x128xf32> to vector<8x128xf32>
    %21 = vector.extract_strided_slice %18 {offsets = [1, 0, 0], sizes = [1, 8, 128], strides = [1, 1, 1]} : vector<4x8x128xf32> to vector<1x8x128xf32>
    %22 = vector.shape_cast %21 : vector<1x8x128xf32> to vector<8x128xf32>
    %23 = vector.extract_strided_slice %18 {offsets = [2, 0, 0], sizes = [1, 8, 128], strides = [1, 1, 1]} : vector<4x8x128xf32> to vector<1x8x128xf32>
    %24 = vector.shape_cast %23 : vector<1x8x128xf32> to vector<8x128xf32>
    %25 = vector.extract_strided_slice %18 {offsets = [3, 0, 0], sizes = [1, 8, 128], strides = [1, 1, 1]} : vector<4x8x128xf32> to vector<1x8x128xf32>
    %26 = vector.shape_cast %25 : vector<1x8x128xf32> to vector<8x128xf32>
    %cst_7 = arith.constant 1.000000e-01 : f32
    %27 = vector.broadcast %cst_7 : f32 to vector<8x128xf32>
    %28 = arith.mulf %20, %27 : vector<8x128xf32>
    %29 = arith.mulf %28, %15 : vector<8x128xf32>
    %30 = arith.addf %11, %29 : vector<8x128xf32>
    %cst_8 = arith.constant 1.000000e-01 : f32
    %31 = vector.broadcast %cst_8 : f32 to vector<8x128xf32>
    %32 = arith.mulf %22, %31 : vector<8x128xf32>
    %33 = arith.mulf %32, %16 : vector<8x128xf32>
    %34 = arith.addf %14, %33 : vector<8x128xf32>
    %cst_9 = arith.constant 2.000000e-01 : f32
    %35 = vector.broadcast %cst_9 : f32 to vector<8x128xf32>
    %36 = arith.mulf %24, %35 : vector<8x128xf32>
    %37 = math.exp %36 : vector<8x128xf32>
    %38 = arith.mulf %15, %37 : vector<8x128xf32>
    %cst_10 = arith.constant 2.000000e-01 : f32
    %39 = vector.broadcast %cst_10 : f32 to vector<8x128xf32>
    %40 = arith.mulf %26, %39 : vector<8x128xf32>
    %41 = math.exp %40 : vector<8x128xf32>
    %42 = arith.mulf %16, %41 : vector<8x128xf32>
    %cst_11 = arith.constant 5.000000e-01 : f32
    %43 = vector.broadcast %cst_11 : f32 to vector<8x128xf32>
    %44 = arith.mulf %43, %38 : vector<8x128xf32>
    %45 = arith.subf %30, %44 : vector<8x128xf32>
    %cst_12 = arith.constant 5.000000e-01 : f32
    %46 = vector.broadcast %cst_12 : f32 to vector<8x128xf32>
    %47 = arith.mulf %46, %42 : vector<8x128xf32>
    %48 = arith.subf %34, %47 : vector<8x128xf32>
    %c0_13 = arith.constant 0 : index
    %c0_14 = arith.constant 0 : index
    %c0_15 = arith.constant 0 : index
    %c0_16 = arith.constant 0 : index
    %49 = vector.load %arg4[%c0_13, %c0_14, %c0_15, %c0_16] : memref<1x4x8x128xf32, #tpu.memory_space<vmem>>, vector<1x1x8x128xf32>
    %50 = vector.shape_cast %49 : vector<1x1x8x128xf32> to vector<8x128xf32>
    %51 = vector.shape_cast %45 : vector<8x128xf32> to vector<1x1x8x128xf32>
    tpu.vector_store %arg4[%c0_13, %c0_14, %c0_15, %c0_16], %51 {strides = array<i32>} : memref<1x4x8x128xf32, #tpu.memory_space<vmem>>, vector<1x1x8x128xf32>,
    %c0_17 = arith.constant 0 : index
    %c1 = arith.constant 1 : index
    %c0_18 = arith.constant 0 : index
    %c0_19 = arith.constant 0 : index
    %52 = vector.load %arg4[%c0_17, %c1, %c0_18, %c0_19] : memref<1x4x8x128xf32, #tpu.memory_space<vmem>>, vector<1x1x8x128xf32>
    %53 = vector.shape_cast %52 : vector<1x1x8x128xf32> to vector<8x128xf32>
    %54 = vector.shape_cast %48 : vector<8x128xf32> to vector<1x1x8x128xf32>
    tpu.vector_store %arg4[%c0_17, %c1, %c0_18, %c0_19], %54 {strides = array<i32>} : memref<1x4x8x128xf32, #tpu.memory_space<vmem>>, vector<1x1x8x128xf32>,
    %55 = arith.addf %45, %38 : vector<8x128xf32>
    %c0_20 = arith.constant 0 : index
    %c2 = arith.constant 2 : index
    %c0_21 = arith.constant 0 : index
    %c0_22 = arith.constant 0 : index
    %56 = vector.load %arg4[%c0_20, %c2, %c0_21, %c0_22] : memref<1x4x8x128xf32, #tpu.memory_space<vmem>>, vector<1x1x8x128xf32>
    %57 = vector.shape_cast %56 : vector<1x1x8x128xf32> to vector<8x128xf32>
    %58 = vector.shape_cast %55 : vector<8x128xf32> to vector<1x1x8x128xf32>
    tpu.vector_store %arg4[%c0_20, %c2, %c0_21, %c0_22], %58 {strides = array<i32>} : memref<1x4x8x128xf32, #tpu.memory_space<vmem>>, vector<1x1x8x128xf32>,
    %59 = arith.addf %48, %42 : vector<8x128xf32>
    %c0_23 = arith.constant 0 : index
    %c3 = arith.constant 3 : index
    %c0_24 = arith.constant 0 : index
    %c0_25 = arith.constant 0 : index
    %60 = vector.load %arg4[%c0_23, %c3, %c0_24, %c0_25] : memref<1x4x8x128xf32, #tpu.memory_space<vmem>>, vector<1x1x8x128xf32>
    %61 = vector.shape_cast %60 : vector<1x1x8x128xf32> to vector<8x128xf32>
    %62 = vector.shape_cast %59 : vector<8x128xf32> to vector<1x1x8x128xf32>
    tpu.vector_store %arg4[%c0_23, %c3, %c0_24, %c0_25], %62 {strides = array<i32>} : memref<1x4x8x128xf32, #tpu.memory_space<vmem>>, vector<1x1x8x128xf32>,
    return
  }
  func.func @transform_0(%arg0: i32, %arg1: i32) -> (i32, i32, i32, i32) {
    %c0_i32 = arith.constant 0 : i32
    %c0_i32_0 = arith.constant 0 : i32
    %c0_i32_1 = arith.constant 0 : i32
    return %arg0, %c0_i32, %arg1, %c0_i32_0 : i32, i32, i32, i32
  }
  func.func @transform_1(%arg0: i32, %arg1: i32) -> (i32, i32, i32) {
    %c0_i32 = arith.constant 0 : i32
    %c0_i32_0 = arith.constant 0 : i32
    %c0_i32_1 = arith.constant 0 : i32
    return %c0_i32, %arg1, %c0_i32_0 : i32, i32, i32
  }
  func.func @transform_2(%arg0: i32, %arg1: i32) -> (i32, i32, i32, i32) {
    %c0_i32 = arith.constant 0 : i32
    %c0_i32_0 = arith.constant 0 : i32
    %c0_i32_1 = arith.constant 0 : i32
    return %arg0, %c0_i32, %arg1, %c0_i32_0 : i32, i32, i32, i32
  }
}

</mosaic_0001>

<llo_original>
// kernel: tpu_custom_call.1
$region0: #{tpu_custom_call.1}
  #allocation0 [shape = 'u32[]', space=smem, size = 0x4, offset = 0x4, fixed_abs, tag = 'smem constant byte address 0x4 - core index']
  #allocation1 [shape = 'u32[144,128]{1,0:T(1,128)}', space=vmem, size = 0x12000, scoped, tag = 'internal scratch']
  %s0 = inlined_call_operand.hbm [shape: f32[2,4,8,128], index: 0, kind: input, shape index: {}]
  %s1 = inlined_call_operand.hbm [shape: f32[4,8,128], index: 1, kind: input, shape index: {}]
  %s2 = inlined_call_operand.hbm [shape: f32[2,4,8,128], index: 2, kind: output, shape index: {}]
  %s3 = sld [smem:[#allocation0]]
  $region49: #{tpu_custom_call.1} parent=0
    _
  %s5 = ssub.s32 1, %s3
  %s6 = scalar_select 0, %s5, %s3
  $region1: #{tpu_custom_call.1} parent=0
    #allocation2 [shape = 'u8[32768]{0}', space=vmem, size = 0x8000, scoped, tag = 'input window, operand 0']
    #allocation3 [shape = 's32[2]{0}', space=sflag, size = 0x8, scoped, tag = 'scoped memory for tpu_custom_call.1']
    #allocation4 [shape = 's32[2]{0}', space=sflag, size = 0x8, scoped, tag = 'scoped memory for tpu_custom_call.1']
    #allocation5 [shape = 'u8[16384]{0}', space=vmem, size = 0x4000, scoped, tag = 'input window, operand 1, single buffered']
    #allocation6 [shape = 's32[1]{0}', space=sflag, size = 0x4, scoped, tag = 'scoped memory for tpu_custom_call.1']
    #allocation7 [shape = 'u8[32768]{0}', space=vmem, size = 0x8000, scoped, tag = 'output window, operand 0']
    %7 = vsyncpa [#allocation3], 0
    %s8 = scalar_lea.sflag [#allocation3], 1
    %9 = vsyncpa %s8, 0
    %10 = vsyncpa [#allocation6], 0
    %11 = vsyncpa [#allocation4], 0
    %s12 = scalar_lea.sflag [#allocation4], 1
    %13 = vsyncpa %s12, 0
    loop: start=0, step=1, limit=4
    $region2: #{tpu_custom_call.1} parent=1 // loop_pre_header
      _
    $region3: #{tpu_custom_call.1} parent=1 // loop_header
      %s15 = sphi 0, %s19
      %p16 = scmp.ge.s32.totalorder %s15, 4
      %s22 = sphi 0, %s34
      %s23 = sphi 0, %s30
      %s24 = sphi 0, %s22
      %s25 = sphi 0, %s23
      %s26 = sphi 0, %s24
      %s27 = sphi 0, %s25
      %s39 = sphi 0, %s41
      %s42 = sphi 0, %s39
      %s43 = sphi 0, %s42
      %s59 = sphi 0, %s43
      %s65 = sphi 0, %s67
      %s68 = sphi 0, %s65
      %s69 = sphi 0, %s68
      %s85 = sphi 0, %s69
      %s93 = sphi 0, %s95
      %s96 = sphi 0, %s93
      %s97 = sphi 0, %s96
      %s113 = sphi 0, %s97
    $region4: #{tpu_custom_call.1} parent=1 // loop_header_branch
      %18 = sbr.rel (%p16) target = $region8
    $region5: #{tpu_custom_call.1} parent=1 // loop_body
      %s20 = ssub.s32 %s15, 1
      %s21 = ssub.s32 %s15, 2
      %s28 = sadd.s32 1, %s23
      %p29 = scmp.ge.s32.totalorder %s28, 1
      %s30 = scalar_select %p29, 0, %s28
      %s31 = sadd.s32 1, %s22
      %s32 = scalar_select %p29, %s31, %s22
      %p33 = scmp.ge.s32.totalorder %s32, 2
      %s34 = scalar_select %p33, 0, %s32
      %s35 = ssub.s32 %s22, %s34
      %s36 = ssub.s32 %s23, %s30
      %s37 = sor.u32 %s35, %s36
      %p38 = scmp.eq.s32.totalorder %s37, 0
      %s40 = sadd.s32 %s39, 1
      %s41 = scalar_select %p38, %s39, %s40
      %p44 = pneg %p38
      %p45 = scmp.eq.s32.totalorder %s15, 1
      %p46 = por %p44, %p45
      %p47 = scmp.ne.s32.totalorder %s39, %s42
      %p48 = scmp.eq.s32.totalorder %s15, 0
      %p49 = por %p47, %p48
      %p50 = scmp.ne.s32.totalorder %s39, %s42
      %p51 = scmp.eq.s32.totalorder %s20, 1
      %p52 = por %p50, %p51
      %p53 = scmp.ne.s32.totalorder %s42, %s43
      %p54 = scmp.eq.s32.totalorder %s20, 0
      %p55 = por %p53, %p54
      %p56 = scmp.ne.s32.totalorder %s42, %s43
      %p57 = scmp.eq.s32.totalorder %s21, 1
      %p58 = por %p56, %p57
      %p60 = scmp.ne.s32.totalorder %s43, %s59
      %p61 = scmp.eq.s32.totalorder %s21, 0
      %p62 = por %p60, %p61
      %s63 = ssub.s32 %s23, %s30
      %p64 = scmp.eq.s32.totalorder %s63, 0
      %s66 = sadd.s32 %s65, 1
      %s67 = scalar_select %p64, %s65, %s66
      %p70 = pneg %p64
      %p71 = scmp.eq.s32.totalorder %s15, 1
      %p72 = por %p70, %p71
      %p73 = scmp.ne.s32.totalorder %s65, %s68
      %p74 = scmp.eq.s32.totalorder %s15, 0
      %p75 = por %p73, %p74
      %p76 = scmp.ne.s32.totalorder %s65, %s68
      %p77 = scmp.eq.s32.totalorder %s20, 1
      %p78 = por %p76, %p77
      %p79 = scmp.ne.s32.totalorder %s68, %s69
      %p80 = scmp.eq.s32.totalorder %s20, 0
      %p81 = por %p79, %p80
      %p82 = scmp.ne.s32.totalorder %s68, %s69
      %p83 = scmp.eq.s32.totalorder %s21, 1
      %p84 = por %p82, %p83
      %p86 = scmp.ne.s32.totalorder %s69, %s85
      %p87 = scmp.eq.s32.totalorder %s21, 0
      %p88 = por %p86, %p87
      %s89 = ssub.s32 %s22, %s34
      %s90 = ssub.s32 %s23, %s30
      %s91 = sor.u32 %s89, %s90
      %p92 = scmp.eq.s32.totalorder %s91, 0
      %s94 = sadd.s32 %s93, 1
      %s95 = scalar_select %p92, %s93, %s94
      %p98 = pneg %p92
      %p99 = scmp.eq.s32.totalorder %s15, 1
      %p100 = por %p98, %p99
      %p101 = scmp.ne.s32.totalorder %s93, %s96
      %p102 = scmp.eq.s32.totalorder %s15, 0
      %p103 = por %p101, %p102
      %p104 = scmp.ne.s32.totalorder %s93, %s96
      %p105 = scmp.eq.s32.totalorder %s20, 1
      %p106 = por %p104, %p105
      %p107 = scmp.ne.s32.totalorder %s96, %s97
      %p108 = scmp.eq.s32.totalorder %s20, 0
      %p109 = por %p107, %p108
      %p110 = scmp.ne.s32.totalorder %s96, %s97
      %p111 = scmp.eq.s32.totalorder %s21, 1
      %p112 = por %p110, %p111
      %p114 = scmp.ne.s32.totalorder %s97, %s113
      %p115 = scmp.eq.s32.totalorder %s21, 0
      %p116 = por %p114, %p115
      %p117 = scmp.le.s32.totalorder 1, %s15
      %p118 = scmp.lt.s32.totalorder %s15, 3
      %p119 = pnand %p117, %p118
      %p120 = pneg %p119
      // Predicated region
      $region9: #{tpu_custom_call.1} parent=5 // pred_check
        _
      $region10: #{tpu_custom_call.1} parent=5 // pred_check_branch
        %122 = sbr.rel (%p119) target = $region12
      $region11: #{tpu_custom_call.1} parent=5 // pred_region
        %s123 = ssub.s32 %s15, 1
        // Predicated region
        $region13: #{tpu_custom_call.1} parent=11 // pred_check
          %p124 = pneg %p81
        $region14: #{tpu_custom_call.1} parent=11 // pred_check_branch
          %126 = sbr.rel (%p124) target = $region16
        $region15: #{tpu_custom_call.1} parent=11 // pred_region
          %s128 = ssub.s32 512, 512
          %129 = vsyncadd [#allocation6], %s128
          %s130 = smul.addr %s25, 128
          %s131 = scalar_lea.hbm %s1, %s130
          %s132 = sshll.u32 [#allocation5], 4
          %s133 = int_to_ptr.vmem [resolvable:$true] %s132
          %138 = dma.hbm_to_vmem [thread:$0]  %s131, 512, %s133, [#allocation6], 128, 128, 8
        $region16: #{tpu_custom_call.1} parent=11 // pred_fallthru
          _
      $region12: #{tpu_custom_call.1} parent=5 // pred_fallthru
        _
      %p139 = scmp.lt.s32.totalorder %s15, 2
      // Predicated region
      $region17: #{tpu_custom_call.1} parent=5 // pred_check
        %p140 = pneg %p139
      $region18: #{tpu_custom_call.1} parent=5 // pred_check_branch
        %142 = sbr.rel (%p140) target = $region20
      $region19: #{tpu_custom_call.1} parent=5 // pred_region
        // Predicated region
        $region21: #{tpu_custom_call.1} parent=19 // pred_check
          %p143 = pneg %p49
        $region22: #{tpu_custom_call.1} parent=19 // pred_check_branch
          %145 = sbr.rel (%p143) target = $region24
        $region23: #{tpu_custom_call.1} parent=19 // pred_region
          %s146 = sand.u32 %s39, 1
          %s147 = scalar_lea.sflag [#allocation3], %s146
          %s148 = sand.u32 %s39, 1
          %s149 = smul.addr %s148, 32
          %s150 = scalar_lea.vmem [#allocation2], %s149
          %s152 = ssub.s32 512, 512
          %153 = vsyncadd %s147, %s152
          %s154 = smul.addr %s22, 4
          %s155 = sadd.s32 %s23, %s154
          %s156 = smul.addr %s155, 128
          %s157 = scalar_lea.hbm %s0, %s156
          %s158 = sshll.u32 %s150, 4
          %s159 = int_to_ptr.vmem [resolvable:$true] %s158
          %164 = dma.hbm_to_vmem [thread:$0]  %s157, 512, %s159, %s147, 128, 128, 8
        $region24: #{tpu_custom_call.1} parent=19 // pred_fallthru
          _
      $region20: #{tpu_custom_call.1} parent=5 // pred_fallthru
        _
      %p165 = scmp.le.s32.totalorder 1, %s15
      %p166 = scmp.lt.s32.totalorder %s15, 3
      %p167 = pnand %p165, %p166
      %p168 = pneg %p167
      // Predicated region
      $region25: #{tpu_custom_call.1} parent=5 // pred_check
        _
      $region26: #{tpu_custom_call.1} parent=5 // pred_check_branch
        %170 = sbr.rel (%p167) target = $region28
      $region27: #{tpu_custom_call.1} parent=5 // pred_region
        %s171 = ssub.s32 %s15, 1
        %s172 = sand.u32 %s42, 1
        %s173 = scalar_lea.sflag [#allocation3], %s172
        %s174 = sand.u32 %s42, 1
        %s175 = smul.addr %s174, 32
        %s176 = scalar_lea.vmem [#allocation2], %s175
        // Predicated region
        $region29: #{tpu_custom_call.1} parent=27 // pred_check
          %p177 = pneg %p55
        $region30: #{tpu_custom_call.1} parent=27 // pred_check_branch
          %179 = sbr.rel (%p177) target = $region32
        $region31: #{tpu_custom_call.1} parent=27 // pred_region
          %180 = dma.done %s173, 512
        $region32: #{tpu_custom_call.1} parent=27 // pred_fallthru
          _
        // Predicated region
        $region33: #{tpu_custom_call.1} parent=27 // pred_check
          %p181 = pneg %p81
        $region34: #{tpu_custom_call.1} parent=27 // pred_check_branch
          %183 = sbr.rel (%p181) target = $region36
        $region35: #{tpu_custom_call.1} parent=27 // pred_region
          %184 = dma.done [#allocation6], 512
        $region36: #{tpu_custom_call.1} parent=27 // pred_fallthru
          _
        %s185 = sand.u32 %s42, 1
        %s186 = scalar_lea.sflag [#allocation3], %s185
        %s187 = sand.u32 %s42, 1
        %s188 = smul.addr %s187, 32
        %s189 = scalar_lea.vmem [#allocation2], %s188
        %p190 = pneg %p55
        %p191 = pneg %p52
        %p192 = pneg %p81
        %p193 = pneg %p78
        %p194 = pneg %p109
        %p195 = pneg %p106
        %s196 = sand.u32 %s96, 1
        %s197 = scalar_lea.sflag [#allocation4], %s196
        %s198 = sand.u32 %s96, 1
        %s199 = smul.addr %s198, 32
        %s200 = scalar_lea.vmem [#allocation7], %s199
        %v201 = vld [vmem:[#allocation5] sm:$0xff]
        %v202 = vld [vmem:[#allocation5 + $0x8] sm:$0xff]
        %v203 = vld [vmem:[#allocation5 + $0x10] sm:$0xff]
        %v204 = vld [vmem:[#allocation5 + $0x18] sm:$0xff]
        %v205 = vadd.f32 %v201, %v203
        %v206 = vmul.f32 %v205, 0.5
        %v207 = vadd.f32 %v202, %v204
        %v208 = vmul.f32 %v207, 0.5
        %v209 = vsub.f32 %v203, %v201
        %v210 = vsub.f32 %v204, %v202
        %v211 = vld [vmem:[%s176] sm:$0xff]
        %v212 = vld [vmem:[%s176 + $0x8] sm:$0xff]
        %v213 = vld [vmem:[%s176 + $0x10] sm:$0xff]
        %v214 = vld [vmem:[%s176 + $0x18] sm:$0xff]
        %v215 = vmul.f32 %v211, 0.1
        %v216 = vmul.f32 %v215, %v209
        %v217 = vadd.f32 %v206, %v216
        %v218 = vmul.f32 %v212, 0.1
        %v219 = vmul.f32 %v218, %v210
        %v220 = vadd.f32 %v208, %v219
        %v221 = vmul.f32 %v213, 0.2
        %v222 = vmul.f32 %v221, 1.442695
        %v223 = vpow.pop %v222
        %v224 = vmul.f32 %v209, %v223
        %v225 = vmul.f32 %v214, 0.2
        %v226 = vmul.f32 %v225, 1.442695
        %v227 = vpow.pop %v226
        %v228 = vmul.f32 %v210, %v227
        %v229 = vmul.f32 %v224, 0.5
        %v230 = vsub.f32 %v217, %v229
        %v231 = vmul.f32 %v228, 0.5
        %v232 = vsub.f32 %v220, %v231
        %233 = vst [vmem:[%s200] sm:$0xff] %v230
        %s234 = scalar_lea.vmem %s200, 8 [#allocation7]
        %235 = vst [vmem:[%s234] sm:$0xff] %v232
        %v236 = vadd.f32 %v230, %v224
        %s237 = scalar_lea.vmem %s200, 16 [#allocation7]
        %238 = vst [vmem:[%s237] sm:$0xff] %v236
        %v239 = vadd.f32 %v232, %v228
        %s240 = scalar_lea.vmem %s200, 24 [#allocation7]
        %241 = vst [vmem:[%s240] sm:$0xff] %v239
        %s242 = sand.u32 %s96, 1
        %s243 = scalar_lea.sflag [#allocation4], %s242
        %s244 = sand.u32 %s96, 1
        %s245 = smul.addr %s244, 32
        %s246 = scalar_lea.vmem [#allocation7], %s245
        // Predicated region
        $region37: #{tpu_custom_call.1} parent=27 // pred_check
          %p247 = pneg %p106
        $region38: #{tpu_custom_call.1} parent=27 // pred_check_branch
          %249 = sbr.rel (%p247) target = $region40
        $region39: #{tpu_custom_call.1} parent=27 // pred_region
          %s251 = ssub.s32 512, 512
          %252 = vsyncadd %s243, %s251
          %s253 = smul.addr %s24, 4
          %s254 = sadd.s32 %s25, %s253
          %s255 = smul.addr %s254, 128
          %s256 = scalar_lea.hbm %s2, %s255
          %s257 = sshll.u32 %s246, 4
          %s258 = int_to_ptr.vmem [resolvable:$true] %s257
          %263 = dma.vmem_to_hbm [thread:$0]  %s258, 512, %s256, %s243, 128, 128, 8
        $region40: #{tpu_custom_call.1} parent=27 // pred_fallthru
          _
      $region28: #{tpu_custom_call.1} parent=5 // pred_fallthru
        _
      %p264 = scmp.le.s32.totalorder 2, %s15
      // Predicated region
      $region41: #{tpu_custom_call.1} parent=5 // pred_check
        %p265 = pneg %p264
      $region42: #{tpu_custom_call.1} parent=5 // pred_check_branch
        %267 = sbr.rel (%p265) target = $region44
      $region43: #{tpu_custom_call.1} parent=5 // pred_region
        %s268 = ssub.s32 %s15, 2
        // Predicated region
        $region45: #{tpu_custom_call.1} parent=43 // pred_check
          %p269 = pneg %p112
        $region46: #{tpu_custom_call.1} parent=43 // pred_check_branch
          %271 = sbr.rel (%p269) target = $region48
        $region47: #{tpu_custom_call.1} parent=43 // pred_region
          %s272 = sand.u32 %s97, 1
          %s273 = scalar_lea.sflag [#allocation4], %s272
          %s274 = sand.u32 %s97, 1
          %s275 = smul.addr %s274, 32
          %s276 = scalar_lea.vmem [#allocation7], %s275
          %277 = dma.done %s273, 512
        $region48: #{tpu_custom_call.1} parent=43 // pred_fallthru
          _
      $region44: #{tpu_custom_call.1} parent=5 // pred_fallthru
        _
    $region6: #{tpu_custom_call.1} parent=1 // loop_footer
      %s19 = sadd.s32 1, %s15
    $region7: #{tpu_custom_call.1} parent=1 // loop_footer_branch
      %14 = sbr.rel target = $region3
    $region8: #{tpu_custom_call.1} parent=1 // loop_exit
      _
    %278 = vsyncpa [#allocation3], 1
    %s279 = scalar_lea.sflag [#allocation3], 1
    %280 = vsyncpa %s279, 1
    %281 = vsyncpa [#allocation6], 1
    %282 = vsyncpa [#allocation4], 1
    %s283 = scalar_lea.sflag [#allocation4], 1
    %284 = vsyncpa %s283, 1

</llo_original>
